<compile_context>
chip_gen: v7x
topology: tpu7x:2x2x1
jax: 0.10.0
libtpu: 0.0.40
codegen_flags: <defaults>
</compile_context>

<pallas_src>
import functools

import jax
import jax.numpy as jnp
from jax import lax
from jax.experimental import pallas as pl
from jax.experimental.pallas import tpu as pltpu

NUM_OBJ = 4          # static upper bound on object-index values (synthetic data: 0..NUM_OBJ-1)
MAX_DISP = 32        # cfg.model.max_disp
_VMEM_LIMIT = 56 * 1024 * 1024   # leave headroom inside v7x's 64 MiB physical VMEM


def _round_up(x, m):
    return ((x + m - 1) // m) * m


# ----------------------------------------------------------------------------------
# Pallas kernels
# ----------------------------------------------------------------------------------
def _linear_kernel(x_ref, w_ref, b_ref, o_ref):
    # (tm, Kp) @ (Kp, Cp) + (1, Cp); bf16 MXU operands, f32 accumulation, lane-dense out.
    x = x_ref[...].astype(jnp.bfloat16)
    w = w_ref[...].astype(jnp.bfloat16)
    o_ref[...] = jnp.dot(x, w, preferred_element_type=jnp.float32) + b_ref[...]


def _cost_softargmin_kernel(ref_ref, tgt_ref, o_ref, *, W, D):
    # ref/tgt blocks: (1, C, L);  output block: (1, 1, L)   (L = rows_per_tile * W)
    # Per-disparity shift = lane rotation (XLU) + mask; online softmax over d (no (D,L)
    # intermediate, single fused pass per disparity).  Tiles are row-aligned, so the
    # jx>=d mask also covers the roll wraparound at the tile start.
    ref = ref_ref[0]                                              # (C, L) f32
    tgt = tgt_ref[0]                                              # (C, L) f32
    _, L = ref.shape
    jx = lax.broadcasted_iota(jnp.int32, (1, L), 1) % W           # column within image row
    m = s = num = None
    for d in range(D):
        t_sh = tgt if d == 0 else pltpu.roll(tgt, shift=d, axis=1)
        t_sh = jnp.where(jx >= d, t_sh, 0.0)                      # zero where shift crosses a row
        corr_d = jnp.sum(ref * t_sh, axis=0, keepdims=True)       # (1, L)
        if d == 0:
            m = corr_d
            s = jnp.ones_like(corr_d)
            num = jnp.zeros_like(corr_d)
        else:
            m_new = jnp.maximum(m, corr_d)
            alpha = jnp.exp(m - m_new)
            p = jnp.exp(corr_d - m_new)
            s = alpha * s + p
            num = alpha * num + jnp.float32(d) * p
            m = m_new
    o_ref[0] = num * pl.reciprocal(s, approx=True)                # soft arg-max disparity


def _grid_stats_kernel(idx_ref, feat_ref, mean_ref, cnt_ref, acc_ref, *, Gp, nC):
    # Scatter-mean over HW tiles (reduction grid axis) with a single wide MXU matmul:
    #   idx block : (1, 1, t_hw) int32   (bin index per pixel; occluded -> trash bin)
    #   feat block: (1, nCp, t_hw) f32   rows = [q(C), k(C), (g(C)), ones, zero-pad]
    #   acc_ref   : (nCp, Gp) f32 VMEM scratch (sums + counts, accumulated over HW)
    #   outputs   : mean (1, nC, Gp) f32, counts (1, 1, Gp) f32
    hw_i = pl.program_id(1)

    @pl.when(hw_i == 0)
    def _():
        acc_ref[...] = jnp.zeros_like(acc_ref)

    idx = idx_ref[0]                                              # (1, t_hw) int32
    t_hw = idx.shape[-1]
    gid = lax.broadcasted_iota(jnp.int32, (Gp, t_hw), 0)
    # one-hot built directly in bf16 (no f32 intermediate)
    onehot_t = jnp.where(gid == idx,
                         jnp.ones((), jnp.bfloat16),
                         jnp.zeros((), jnp.bfloat16))             # (Gp, t_hw)

    f_all = feat_ref[0].astype(jnp.bfloat16)                      # (nCp, t_hw)
    acc_ref[...] += lax.dot_general(f_all, onehot_t, (((1,), (1,)), ((), ())),
                                    preferred_element_type=jnp.float32)   # (nCp, Gp)

    @pl.when(hw_i == pl.num_programs(1) - 1)
    def _():
        acc = acc_ref[...]
        counts = acc[nC:nC + 1, :]                                # ones-row @ onehot = counts
        # torch scatter_reduce(reduce='mean', include_self=True) on a zero tensor divides
        # by (count + 1); empty bins stay 0.  approx reciprocal -> EUP slot.
        inv = pl.reciprocal(counts + 1.0, approx=True)
        mean_ref[0] = acc[:nC, :] * inv
        cnt_ref[0] = counts


def _grid_gather_kernel(idx_ref, kmean_ref, out_ref, *, Gp):
    # gathered[:, p] = k_mean[:, idx[p]]  via  k_mean @ onehot_t  (needs finalized means,
    # hence a separate tiny call).  bf16 rounding of k_mean is immaterial: the consumer
    # (sub-level scatter) re-casts to bf16 before its own MXU matmul anyway.
    idx = idx_ref[0]                                              # (1, t_hw)
    t_hw = idx.shape[-1]
    gid = lax.broadcasted_iota(jnp.int32, (Gp, t_hw), 0)
    onehot_t = jnp.where(gid == idx,
                         jnp.ones((), jnp.bfloat16),
                         jnp.zeros((), jnp.bfloat16))             # (Gp, t_hw)
    km = kmean_ref[0].astype(jnp.bfloat16)                        # (C, Gp)
    out_ref[0] = jnp.dot(km, onehot_t, preferred_element_type=jnp.float32)   # (C, t_hw)


def _contrastive_kernel(*refs, T, weight, n_keys):
    # Lane-dense normalized InfoNCE (proportion == 1.0).
    #   refs = q (C, N), keys[0..n_keys-1] (C, N), valid (1, N), out (1, 1)
    # N = B*n_bins (multiple of 128).  qn / validity / averaging shared across key sets.
    q_ref = refs[0]
    key_refs = refs[1:1 + n_keys]
    v_ref = refs[1 + n_keys]
    o_ref = refs[2 + n_keys]

    inv_t = jnp.float32(1.0 / T)
    v = v_ref[...]                                                # (1, N)

    def l2norm_cols(x):                                           # F.normalize(dim=C), eps=1e-12
        ss = jnp.sum(x * x, axis=0, keepdims=True)
        return x * lax.rsqrt(jnp.maximum(ss, 1e-24))

    qn = l2norm_cols(q_ref[...]).astype(jnp.bfloat16)             # (C, N) bf16 MXU operand
    qf = qn.astype(jnp.float32)

    total = jnp.zeros((1, 1), jnp.float32)
    for kr in key_refs:
        kn = l2norm_cols(kr[...]).astype(jnp.bfloat16)
        kf = kn.astype(jnp.float32)
        # pos from the same bf16 operands as the MXU logits -> numerator/denominator consistent
        pos = jnp.sum(qf * kf, axis=0, keepdims=True) * inv_t     # (1, N)
        logits = lax.dot_general(qn, kn, (((0,), (0,)), ((), ())),
                                 preferred_element_type=jnp.float32) * inv_t   # (N, N)
        # |logits| <= 1/T = 20 so exp is safe in f32 (T fixed at 0.05); keep f32 (v5e EUP).
        e = jnp.exp(logits) * v                                   # mask invalid key columns
        denom = jnp.sum(e, axis=1, keepdims=True)                 # (N, 1)
        logd = jnp.log(denom + 1e-30)
        total = total + (lax.dot_general(v, logd, (((1,), (0,)), ((), ())),
                                         preferred_element_type=jnp.float32)
                         - jnp.sum(v * pos, axis=1, keepdims=True))
    nvalid = jnp.maximum(jnp.sum(v, axis=1, keepdims=True), 1.0)
    o_ref[...] = total * pl.reciprocal(nvalid, approx=True) * weight


# ----------------------------------------------------------------------------------
# Pallas wrappers
# ----------------------------------------------------------------------------------
def linear_pallas(x, w, b, tm=256):
    M, K = x.shape
    Cout = w.shape[1]
    Kp = _round_up(K, 128)
    Cp = _round_up(Cout, 128)                                     # lane-dense output tile
    if Kp != K:
        x = jnp.pad(x, ((0, 0), (0, Kp - K)))
        w = jnp.pad(w, ((0, Kp - K), (0, 0)))
    if Cp != Cout:
        w = jnp.pad(w, ((0, 0), (0, Cp - Cout)))
        b = jnp.pad(b, (0, Cp - Cout))
    tm = min(tm, _round_up(M, 8))
    Mp = _round_up(M, tm)
    if Mp != M:
        x = jnp.pad(x, ((0, Mp - M), (0, 0)))
    out = pl.pallas_call(
        _linear_kernel,
        out_shape=jax.ShapeDtypeStruct((Mp, Cp), jnp.float32),
        grid=(Mp // tm,),
        in_specs=[
            pl.BlockSpec((tm, Kp), lambda i: (i, 0)),
            pl.BlockSpec((Kp, Cp), lambda i: (0, 0)),
            pl.BlockSpec((1, Cp), lambda i: (0, 0)),
        ],
        out_specs=pl.BlockSpec((tm, Cp), lambda i: (i, 0)),
        compiler_params=pltpu.CompilerParams(
            dimension_semantics=("parallel",), vmem_limit_bytes=_VMEM_LIMIT),
    )(x, w, b.reshape(1, Cp))
    return out[:M, :Cout]


def cost_softargmin(ref_fms, tgt_fms, D):
    B, C, H, W = ref_fms.shape
    HW = H * W
    # row-aligned tiling when a multiple-of-128 lane tile exists (v7x VMEM / pipelining);
    # at toy sizes this falls back to one full-HW block.
    rt = H
    for cand in range(1, H + 1):
        if H % cand == 0 and (cand * W) % 128 == 0 and cand * W >= 512:
            rt = cand
            break
    L = rt * W
    reff = ref_fms.reshape(B, C, HW)
    tgtf = tgt_fms.reshape(B, C, HW)
    kern = functools.partial(_cost_softargmin_kernel, W=W, D=D)
    out = pl.pallas_call(
        kern,
        out_shape=jax.ShapeDtypeStruct((B, 1, HW), jnp.float32),
        grid=(B, H // rt),
        in_specs=[
            pl.BlockSpec((1, C, L), lambda b, r: (b, 0, r)),
            pl.BlockSpec((1, C, L), lambda b, r: (b, 0, r)),
        ],
        out_specs=pl.BlockSpec((1, 1, L), lambda b, r: (b, 0, r)),
        compiler_params=pltpu.CompilerParams(
            dimension_semantics=("parallel", "parallel"),
            vmem_limit_bytes=_VMEM_LIMIT),
    )(reff, tgtf)
    return out.reshape(B, 1, H, W)


def _pick_hw_tile(HW, target=4096):
    if HW <= target:
        return HW
    best = HW
    t = 128
    while t <= target:
        if HW % t == 0:
            best = t                    # largest multiple-of-128 divisor <= target
        t += 128
    return best


def grid_scatter_gather(index_grid, feats, C, Gp):
    # index_grid: (B, 1, HW) int32;  feats: list of (B, C, HW) f32
    # Returns (means (B, n_feat*C, Gp), counts (B, 1, Gp), gathered_keys (B, C, HW)).
    B, _, HW = index_grid.shape
    n_feat = len(feats)
    nC = n_feat * C
    nCp = _round_up(nC + 1, 8)

    # one slab: features + ones row (for counts) + zero pad -> one wide MXU matmul in-kernel
    pieces = list(feats) + [jnp.ones((B, 1, HW), jnp.float32)]
    if nCp != nC + 1:
        pieces.append(jnp.zeros((B, nCp - nC - 1, HW), jnp.float32))
    feat_all = jnp.concatenate(pieces, axis=1)                    # (B, nCp, HW)

    t_hw = _pick_hw_tile(HW)
    n_hw = HW // t_hw

    stats_kern = functools.partial(_grid_stats_kernel, Gp=Gp, nC=nC)
    means, counts = pl.pallas_call(
        stats_kern,
        out_shape=(jax.ShapeDtypeStruct((B, nC, Gp), jnp.float32),
                   jax.ShapeDtypeStruct((B, 1, Gp), jnp.float32)),
        grid=(B, n_hw),
        in_specs=[
            pl.BlockSpec((1, 1, t_hw), lambda b, r: (b, 0, r)),
            pl.BlockSpec((1, nCp, t_hw), lambda b, r: (b, 0, r)),
        ],
        out_specs=(pl.BlockSpec((1, nC, Gp), lambda b, r: (b, 0, 0)),
                   pl.BlockSpec((1, 1, Gp), lambda b, r: (b, 0, 0))),
        scratch_shapes=[pltpu.VMEM((nCp, Gp), jnp.float32)],
        compiler_params=pltpu.CompilerParams(
            dimension_semantics=("parallel", "arbitrary"),
            vmem_limit_bytes=_VMEM_LIMIT),
    )(index_grid, feat_all)

    # gather of the key means: separate call, reads only the finalized (C, Gp) means.
    k_mean = means[:, C:2 * C, :]                                  # (B, C, Gp)
    gather_kern = functools.partial(_grid_gather_kernel, Gp=Gp)
    gathered = pl.pallas_call(
        gather_kern,
        out_shape=jax.ShapeDtypeStruct((B, C, HW), jnp.float32),
        grid=(B, n_hw),
        in_specs=[
            pl.BlockSpec((1, 1, t_hw), lambda b, r: (b, 0, r)),
            pl.BlockSpec((1, C, Gp), lambda b, r: (b, 0, 0)),
        ],
        out_specs=pl.BlockSpec((1, C, t_hw), lambda b, r: (b, 0, r)),
        compiler_params=pltpu.CompilerParams(
            dimension_semantics=("parallel", "parallel"),
            vmem_limit_bytes=_VMEM_LIMIT),
    )(index_grid, k_mean)
    return means, counts, gathered


def contrastive_loss(q_cols, key_cols_list, valid_row, T, weight):
    # q/keys: (C, N) lane-dense; valid: (1, N).  One fused kernel for all key sets.
    C, N = q_cols.shape
    Np = _round_up(N, 128)

    def pad(x):
        return jnp.pad(x, ((0, 0), (0, Np - N))) if Np != N else x

    qp = pad(q_cols)
    keys = [pad(k) for k in key_cols_list]
    vp = pad(valid_row)
    n_keys = len(keys)
    kern = functools.partial(_contrastive_kernel, T=T, weight=weight, n_keys=n_keys)
    out = pl.pallas_call(
        kern,
        out_shape=jax.ShapeDtypeStruct((1, 1), jnp.float32),
        grid=(1,),
        in_specs=[pl.BlockSpec((C, Np), lambda i: (0, 0))] * (1 + n_keys)
                 + [pl.BlockSpec((1, Np), lambda i: (0, 0))],
        out_specs=pl.BlockSpec((1, 1), lambda i: (0, 0)),
        compiler_params=pltpu.CompilerParams(vmem_limit_bytes=_VMEM_LIMIT),
    )(qp, *keys, vp)
    return out[0, 0]


# ----------------------------------------------------------------------------------
# Plain-JAX glue (gathers / interpolation / index bookkeeping)
# ----------------------------------------------------------------------------------
def grid_sample_bilinear_zeros(img, grid):
    # img: (B, C, H, W); grid: (B, H, W, 2) in [-1, 1]; align_corners=False, zeros padding
    B, C, H, W = img.shape
    gx, gy = grid[..., 0], grid[..., 1]
    ix = ((gx + 1.0) * W - 1.0) * 0.5
    iy = ((gy + 1.0) * H - 1.0) * 0.5
    x0 = jnp.floor(ix)
    y0 = jnp.floor(iy)
    x1, y1 = x0 + 1.0, y0 + 1.0
    wx1, wy1 = ix - x0, iy - y0
    wx0, wy0 = 1.0 - wx1, 1.0 - wy1
    imgf = img.reshape(B, C, H * W)

    def gather(xi, yi):
        xi_i = xi.astype(jnp.int32)
        yi_i = yi.astype(jnp.int32)
        inb = (xi_i >= 0) & (xi_i < W) & (yi_i >= 0) & (yi_i < H)
        xc = jnp.clip(xi_i, 0, W - 1)
        yc = jnp.clip(yi_i, 0, H - 1)
        flat = (yc * W + xc).reshape(B, 1, H * W)
        idx = jnp.broadcast_to(flat, (B, C, H * W))
        vals = jnp.take_along_axis(imgf, idx, axis=2).reshape(B, C, H, W)
        return vals * inb.astype(img.dtype).reshape(B, 1, H, W)

    out = (
        gather(x0, y0) * (wx0 * wy0)[:, None]
        + gather(x1, y0) * (wx1 * wy0)[:, None]
        + gather(x0, y1) * (wx0 * wy1)[:, None]
        + gather(x1, y1) * (wx1 * wy1)[:, None]
    )
    return out


def warp(img, disp):
    B, C, H, W = img.shape
    x_base = jnp.broadcast_to(jnp.linspace(0.0, 1.0, W)[None, None, :], (B, H, W))
    y_base = jnp.broadcast_to(jnp.linspace(0.0, 1.0, H)[None, :, None], (B, H, W))
    x_shift = disp[:, 0] / W
    flow = jnp.stack([x_base + x_shift, y_base], axis=3)
    return grid_sample_bilinear_zeros(img, 2.0 * flow - 1.0)


def get_occ_mask(left_disp, right_disp, threshold=3.0):
    B, _, H, W = left_disp.shape
    index = jnp.broadcast_to(
        jnp.arange(W, dtype=jnp.float32)[None, None, None, :], (B, 1, H, W)
    )
    index_l2r = warp(index, right_disp)
    index_l2r2l = warp(index_l2r, -left_disp)
    return (jnp.abs(index - index_l2r2l) < threshold).astype(jnp.float32)


def resize_bilinear(x, out_h, out_w):
    B, C = x.shape[:2]
    return jax.image.resize(x, (B, C, out_h, out_w), method="bilinear", antialias=False)


def nearest_interp_torch(x, out_h, out_w):
    # PyTorch F.interpolate(mode='nearest'): src = floor(dst * in / out)
    B, C, H, W = x.shape
    hi = (jnp.arange(out_h) * H // out_h).astype(jnp.int32)
    wi = (jnp.arange(out_w) * W // out_w).astype(jnp.int32)
    return x[:, :, hi][:, :, :, wi]


def make_grid_num(h, w, nh, nw):
    hv, wv = (h // nh) * nh, (w // nw) * nw
    y = jnp.arange(h)
    x = jnp.arange(w)
    cell = (jnp.minimum(y, hv - 1)[:, None] // (h // nh)) * nw + (
        jnp.minimum(x, wv - 1)[None, :] // (w // nw)
    )
    valid = (y[:, None] < hv) & (x[None, :] < wv)
    return jnp.where(valid, cell, 0).astype(jnp.int32)


# ----------------------------------------------------------------------------------
# get_grid_loss / DualLevelContrastiveLoss (HODC hot path)
# ----------------------------------------------------------------------------------
def get_grid_loss_pallas(feat_query, feat_key, mask_occ, index, num_h, num_w, T,
                         weight=1.0, num_obj=NUM_OBJ, global_rep=None):
    B, C, H, W = feat_query.shape
    HW = H * W
    G0 = num_h * num_w
    n_bins = num_obj * G0                   # real (object, cell) bins; trash bin excluded
    Gp = _round_up(n_bins + 1, 128)         # pad bin axis to a lane multiple (128)

    fq = feat_query.reshape(B, C, HW)
    fk = feat_key.reshape(B, C, HW)
    mo = mask_occ.reshape(B, HW) > 0.5
    idx = index.reshape(B, HW).astype(jnp.int32)          # torch .long() truncation

    grid_num = make_grid_num(H, W, num_h, num_w).reshape(1, HW)
    index_grid = idx * G0 + grid_num
    index_grid = jnp.where(mo, index_grid, n_bins)        # occluded -> trash bin
    index_grid = index_grid.reshape(B, 1, HW)

    feats = [fq, fk]
    if global_rep is not None:
        feats.append(global_rep.reshape(B, C, HW))

    means, counts, gathered_keys = grid_scatter_gather(index_grid, feats, C, Gp)

    def cols(lo):                                         # (B, nC, Gp) -> lane-dense (C, B*n_bins)
        m = means[:, lo:lo + C, :n_bins]
        return jnp.swapaxes(m, 0, 1).reshape(C, B * n_bins)

    q_cols = cols(0)
    key_list = [cols(C)]
    if global_rep is not None:
        key_list.append(cols(2 * C))

    # exact bin validity from the in-kernel counts (review item); the torch reference
    # uses sum(mean)!=0 which only differs for populated bins whose features are all-zero.
    valid_row = (counts[:, 0, :n_bins] > 0).astype(jnp.float32).reshape(1, B * n_bins)

    loss = contrastive_loss(q_cols, key_list, valid_row, T, weight)
    return loss, gathered_keys


def dual_level_contrastive_loss(ref_fms, tgt_fms, left_obj, right_obj,
                                left_disp, right_disp, weight=1.0,
                                num_h=4, num_w=4, factor=2):
    feat_l2r = warp(ref_fms, right_disp)
    mask_occ_l2r = get_occ_mask(-right_disp, -left_disp)
    # (feat_r2l / mask_occ_r2l are computed but unused in the original forward — skipped)
    loss_base, keys_base = get_grid_loss_pallas(
        feat_l2r, tgt_fms, mask_occ_l2r, right_obj, num_h, num_w, 0.05, weight=weight)
    loss_sub, _ = get_grid_loss_pallas(
        feat_l2r, tgt_fms, mask_occ_l2r, right_obj, num_h * factor, num_w * factor, 0.05,
        weight=weight, global_rep=keys_base)
    return {"loss_dual_level_contrastive": (loss_base + loss_sub) / 2.0}


# ----------------------------------------------------------------------------------
# HODC_PSMNet forward
# ----------------------------------------------------------------------------------
def init_params(key, in_ch=3, feat_dim=32, patch=4):
    k1, k2 = jax.random.split(key)
    w = jax.random.normal(k1, (in_ch * patch * patch, feat_dim), jnp.float32) * 0.1
    b = jax.random.normal(k2, (feat_dim,), jnp.float32) * 0.01
    return {"w_embed": w, "b_embed": b}


def patch_embed_apply_pair(params, img_l, img_r, patch=4):
    # both images stacked along M -> one Pallas linear call (shares weight DMA, fills MXU).
    B, Cin, H, W = img_l.shape
    H4, W4 = H // patch, W // patch

    def to_rows(img):
        x = img.reshape(B, Cin, H4, patch, W4, patch)
        return x.transpose(0, 2, 4, 1, 3, 5).reshape(B * H4 * W4, Cin * patch * patch)

    x_both = jnp.concatenate([to_rows(img_l), to_rows(img_r)], axis=0)
    y = linear_pallas(x_both, params["w_embed"], params["b_embed"])
    feat_dim = params["w_embed"].shape[1]
    yl, yr = jnp.split(y, 2, axis=0)

    def to_map(yy):
        return yy.reshape(B, H4, W4, feat_dim).transpose(0, 3, 1, 2)

    return to_map(yl), to_map(yr)


def hodc_psmnet_forward(params, batch, *, max_disp=MAX_DISP, training=True):
    ref_img, tgt_img = batch["leftImage"], batch["rightImage"]
    target_l, target_r = batch["leftDisp"], batch["rightDisp"]
    left_obj, right_obj = batch["leftObjectIndex"], batch["rightObjectIndex"]

    # ---- backbone ----
    # TODO(synk): build_backbone(cfg) (PSMNet feature extractor) is an external builder not
    # given in the source; replaced by a single Pallas patch-embed matmul to 32 channels @ 1/4 res.
    ref_fms, tgt_fms = patch_embed_apply_pair(params, ref_img, tgt_img)

    # ---- cost processor + disparity predictor ----
    # TODO(synk): build_cost_processor / build_disp_predictor are external builders; replaced
    # by a Pallas correlation cost-volume + online soft-argmin kernel (pltpu.roll lane shifts).
    disp_lowres = cost_softargmin(ref_fms, tgt_fms, D=max_disp // 4)
    disps = [disp_lowres]

    if training:
        loss_dict = {}
        # TODO(synk): make_gsm_loss_evaluator is an external builder; smooth-L1 stand-in.
        disp_full = resize_bilinear(disp_lowres, target_l.shape[2], target_l.shape[3]) * 4.0
        diff = jnp.abs(disp_full - target_l)
        loss_dict["loss_gsm_stub"] = jnp.mean(jnp.where(diff < 1.0, 0.5 * diff * diff, diff - 0.5))

        scale_fms = target_l.shape[-1] / ref_fms.shape[-1]
        scale_ori = 0.5  # TODO(synk): original picks random.choice([0.25, 0.5, 1.0]); fixed for determinism
        new_h = int(round(ref_fms.shape[2] * scale_fms * scale_ori))
        new_w = int(round(ref_fms.shape[3] * scale_fms * scale_ori))
        ref_i = resize_bilinear(ref_fms, new_h, new_w)
        tgt_i = resize_bilinear(tgt_fms, new_h, new_w)
        dl_h = int(round(target_l.shape[2] * scale_ori))
        dl_w = int(round(target_l.shape[3] * scale_ori))
        disp_l = resize_bilinear(target_l, dl_h, dl_w) * scale_ori
        disp_r = resize_bilinear(target_r, dl_h, dl_w) * scale_ori
        idx_l = nearest_interp_torch(left_obj, dl_h, dl_w)
        idx_r = nearest_interp_torch(right_obj, dl_h, dl_w)

        # TODO(synk): original picks (num_h, num_w) and factor via random.choice over grid sizes;
        # fixed to (4, 4) and factor 2 so that the grid divides the small synthetic feature map.
        loss_dict.update(
            dual_level_contrastive_loss(
                ref_i, tgt_i, idx_l, idx_r, disp_l, disp_r,
                weight=5.0, num_h=4, num_w=4, factor=2)
        )
        return {}, loss_dict
    else:
        return dict(ref_fms=[ref_fms], tgt_fms=[tgt_fms], disps=disps, costs=[]), {}


# ----------------------------------------------------------------------------------
if __name__ == "__main__":
    key = jax.random.PRNGKey(0)
    ks = jax.random.split(key, 8)
    B, H, W = 2, 32, 32

    batch = {
        "leftImage": jax.random.normal(ks[0], (B, 3, H, W), jnp.float32),
        "rightImage": jax.random.normal(ks[1], (B, 3, H, W), jnp.float32),
        "leftDisp": jax.random.uniform(ks[2], (B, 1, H, W), jnp.float32, 0.0, 6.0),
        "rightDisp": jax.random.uniform(ks[3], (B, 1, H, W), jnp.float32, 0.0, 6.0),
        "leftObjectIndex": jax.random.randint(ks[4], (B, 1, H, W), 0, NUM_OBJ).astype(jnp.float32),
        "rightObjectIndex": jax.random.randint(ks[5], (B, 1, H, W), 0, NUM_OBJ).astype(jnp.float32),
    }
    params = init_params(ks[6])

    results, loss_dict = hodc_psmnet_forward(params, batch, max_disp=MAX_DISP, training=True)
    loss_dict = jax.tree_util.tree_map(jax.block_until_ready, loss_dict)
    assert jnp.isfinite(loss_dict["loss_dual_level_contrastive"])
    assert jnp.isfinite(loss_dict["loss_gsm_stub"])
    print("KERNEL_OK")
</pallas_src>

<mosaic_0001>
module attributes {stable_mosaic.version = 11 : i64} {
  func.func @_linear_kernel(%arg0: i32, %arg1: memref<256x128xf32, #tpu.memory_space<vmem>>, %arg2: memref<128x128xf32, #tpu.memory_space<vmem>>, %arg3: memref<1x128xf32, #tpu.memory_space<vmem>>, %arg4: memref<256x128xf32, #tpu.memory_space<vmem>>) attributes {dimension_semantics = [#tpu.dimension_semantics<parallel>], iteration_bounds = array<i64: 1>, scalar_prefetch = 0 : i64, scratch_operands = 0 : i64, tpu.core_type = #tpu.core_type<tc>, window_params = [{transform_indices = @transform_0, window_bounds = array<i64: 256, 128>}, {pipeline_mode = #tpu.pipeline_mode<synchronous>, transform_indices = @transform_1, window_bounds = array<i64: 128, 128>}, {pipeline_mode = #tpu.pipeline_mode<synchronous>, transform_indices = @transform_2, window_bounds = array<i64: 1, 128>}, {transform_indices = @transform_3, window_bounds = array<i64: 256, 128>}]} {
    %c0 = arith.constant 0 : index
    %c0_0 = arith.constant 0 : index
    %0 = vector.load %arg1[%c0, %c0_0] : memref<256x128xf32, #tpu.memory_space<vmem>>, vector<256x128xf32>
    %1 = arith.truncf %0 : vector<256x128xf32> to vector<256x128xbf16>
    %c0_1 = arith.constant 0 : index
    %c0_2 = arith.constant 0 : index
    %2 = vector.load %arg2[%c0_1, %c0_2] : memref<128x128xf32, #tpu.memory_space<vmem>>, vector<128x128xf32>
    %3 = arith.truncf %2 : vector<128x128xf32> to vector<128x128xbf16>
    %cst = arith.constant dense<0.000000e+00> : vector<256x128xf32>
    %4 = tpu.matmul %1, %3, %cst {dimension_numbers = #tpu.dot_dimension_numbers<[1], [0], [0], [1], [0, 0, 1, 1], [], []>} : vector<256x128xbf16>, vector<128x128xbf16>, vector<256x128xf32> -> vector<256x128xf32>
    %c0_3 = arith.constant 0 : index
    %c0_4 = arith.constant 0 : index
    %5 = vector.load %arg3[%c0_3, %c0_4] : memref<1x128xf32, #tpu.memory_space<vmem>>, vector<1x128xf32>
    %6 = vector.broadcast %5 : vector<1x128xf32> to vector<256x128xf32>
    %7 = arith.addf %4, %6 : vector<256x128xf32>
    %c0_5 = arith.constant 0 : index
    %c0_6 = arith.constant 0 : index
    %8 = vector.load %arg4[%c0_5, %c0_6] : memref<256x128xf32, #tpu.memory_space<vmem>>, vector<256x128xf32>
    tpu.vector_store %arg4[%c0_5, %c0_6], %7 {strides = array<i32>} : memref<256x128xf32, #tpu.memory_space<vmem>>, vector<256x128xf32>,
    return
  }
  func.func @transform_0(%arg0: i32) -> (i32, i32) {
    %c0_i32 = arith.constant 0 : i32
    %c0_i32_0 = arith.constant 0 : i32
    return %arg0, %c0_i32 : i32, i32
  }
  func.func @transform_1(%arg0: i32) -> (i32, i32) {
    %c0_i32 = arith.constant 0 : i32
    %c0_i32_0 = arith.constant 0 : i32
    %c0_i32_1 = arith.constant 0 : i32
    return %c0_i32, %c0_i32_0 : i32, i32
  }
  func.func @transform_2(%arg0: i32) -> (i32, i32) {
    %c0_i32 = arith.constant 0 : i32
    %c0_i32_0 = arith.constant 0 : i32
    %c0_i32_1 = arith.constant 0 : i32
    return %c0_i32, %c0_i32_0 : i32, i32
  }
  func.func @transform_3(%arg0: i32) -> (i32, i32) {
    %c0_i32 = arith.constant 0 : i32
    %c0_i32_0 = arith.constant 0 : i32
    return %arg0, %c0_i32 : i32, i32
  }
}

</mosaic_0001>

<llo_original>
// kernel: tpu_custom_call.1
$region0: #{tpu_custom_call.1}
  #allocation0 [shape = 'u32[]', space=smem, size = 0x4, offset = 0x4, fixed_abs, tag = 'smem constant byte address 0x4 - core index']
  #allocation1 [shape = 'u32[144,128]{1,0:T(1,128)}', space=vmem, size = 0x12000, scoped, tag = 'internal scratch']
  %s0 = inlined_call_operand.hbm [shape: f32[256,128], index: 0, kind: input, shape index: {}]
  %s1 = inlined_call_operand.hbm [shape: f32[128,128], index: 1, kind: input, shape index: {}]
  %s2 = inlined_call_operand.vmem [shape: f32[1,128], index: 2, kind: input, shape index: {}]
  %s3 = inlined_call_operand.hbm [shape: f32[256,128], index: 3, kind: output, shape index: {}]
  %s4 = sld [smem:[#allocation0]]
  $region30: #{tpu_custom_call.1} parent=0
    _
  %s6 = ssub.s32 1, %s4
  %s7 = scalar_select 0, %s6, %s4
  $region1: #{tpu_custom_call.1} parent=0
    #allocation2 [shape = 'u8[131072]{0}', space=vmem, size = 0x20000, scoped, tag = 'input window, operand 0, single buffered']
    #allocation3 [shape = 's32[1]{0}', space=sflag, size = 0x4, scoped, tag = 'scoped memory for tpu_custom_call.1']
    #allocation4 [shape = 's32[1]{0}', space=sflag, size = 0x4, scoped, tag = 'scoped memory for tpu_custom_call.1']
    #allocation5 [shape = 'u8[65536]{0}', space=vmem, size = 0x10000, scoped, tag = 'input window, operand 1, single buffered']
    #allocation6 [shape = 's32[1]{0}', space=sflag, size = 0x4, scoped, tag = 'scoped memory for tpu_custom_call.1']
    #allocation7 [shape = 'u8[131072]{0}', space=vmem, size = 0x20000, scoped, tag = 'output window, operand 0, single buffered']
    %8 = vsyncpa [#allocation3], 0
    %9 = vsyncpa [#allocation6], 0
    %10 = vsyncpa [#allocation4], 0
    // Predicated region
    $region2: #{tpu_custom_call.1} parent=1 // pred_check
      _
    $region3: #{tpu_custom_call.1} parent=1 // pred_check_branch
      %12 = sbr.rel (0) target = $region5
    $region4: #{tpu_custom_call.1} parent=1 // pred_region
      %s14 = ssub.s32 4096, 4096
      %15 = vsyncadd [#allocation3], %s14
      %s16 = sshll.u32 [#allocation2], 4
      %s17 = int_to_ptr.vmem [resolvable:$true] %s16
      %22 = dma.hbm_to_vmem [thread:$0]  %s0, 4096, %s17, [#allocation3], 128, 128, 8
    $region5: #{tpu_custom_call.1} parent=1 // pred_fallthru
      _
    // Predicated region
    $region6: #{tpu_custom_call.1} parent=1 // pred_check
      _
    $region7: #{tpu_custom_call.1} parent=1 // pred_check_branch
      %24 = sbr.rel (0) target = $region9
    $region8: #{tpu_custom_call.1} parent=1 // pred_region
      %s26 = ssub.s32 2048, 2048
      %27 = vsyncadd [#allocation6], %s26
      %s28 = sshll.u32 [#allocation5], 4
      %s29 = int_to_ptr.vmem [resolvable:$true] %s28
      %34 = dma.hbm_to_vmem [thread:$0]  %s1, 2048, %s29, [#allocation6], 128, 128, 8
    $region9: #{tpu_custom_call.1} parent=1 // pred_fallthru
      _
    // Predicated region
    $region10: #{tpu_custom_call.1} parent=1 // pred_check
      _
    $region11: #{tpu_custom_call.1} parent=1 // pred_check_branch
      %36 = sbr.rel (0) target = $region13
    $region12: #{tpu_custom_call.1} parent=1 // pred_region
      _
    $region13: #{tpu_custom_call.1} parent=1 // pred_fallthru
      _
    // Predicated region
    $region14: #{tpu_custom_call.1} parent=1 // pred_check
      _
    $region15: #{tpu_custom_call.1} parent=1 // pred_check_branch
      %38 = sbr.rel (0) target = $region17
    $region16: #{tpu_custom_call.1} parent=1 // pred_region
      %39 = dma.done [#allocation3], 4096
    $region17: #{tpu_custom_call.1} parent=1 // pred_fallthru
      _
    // Predicated region
    $region18: #{tpu_custom_call.1} parent=1 // pred_check
      _
    $region19: #{tpu_custom_call.1} parent=1 // pred_check_branch
      %41 = sbr.rel (0) target = $region21
    $region20: #{tpu_custom_call.1} parent=1 // pred_region
      %42 = dma.done [#allocation6], 2048
    $region21: #{tpu_custom_call.1} parent=1 // pred_fallthru
      _
    %v44 = vld [vmem:[#allocation2] sm:$0xff]
    %v45 = vld [vmem:[#allocation2 + $0x8] sm:$0xff]
    %v46 = vld [vmem:[#allocation2 + $0x10] sm:$0xff]
    %v47 = vld [vmem:[#allocation2 + $0x18] sm:$0xff]
    %v48 = vld [vmem:[#allocation2 + $0x20] sm:$0xff]
    %v49 = vld [vmem:[#allocation2 + $0x28] sm:$0xff]
    %v50 = vld [vmem:[#allocation2 + $0x30] sm:$0xff]
    %v51 = vld [vmem:[#allocation2 + $0x38] sm:$0xff]
    %v52 = vld [vmem:[#allocation2 + $0x40] sm:$0xff]
    %v53 = vld [vmem:[#allocation2 + $0x48] sm:$0xff]
    %v54 = vld [vmem:[#allocation2 + $0x50] sm:$0xff]
    %v55 = vld [vmem:[#allocation2 + $0x58] sm:$0xff]
    %v56 = vld [vmem:[#allocation2 + $0x60] sm:$0xff]
    %v57 = vld [vmem:[#allocation2 + $0x68] sm:$0xff]
    %v58 = vld [vmem:[#allocation2 + $0x70] sm:$0xff]
    %v59 = vld [vmem:[#allocation2 + $0x78] sm:$0xff]
    %v60 = vld [vmem:[#allocation2 + $0x80] sm:$0xff]
    %v61 = vld [vmem:[#allocation2 + $0x88] sm:$0xff]
    %v62 = vld [vmem:[#allocation2 + $0x90] sm:$0xff]
    %v63 = vld [vmem:[#allocation2 + $0x98] sm:$0xff]
    %v64 = vld [vmem:[#allocation2 + $0xa0] sm:$0xff]
    %v65 = vld [vmem:[#allocation2 + $0xa8] sm:$0xff]
    %v66 = vld [vmem:[#allocation2 + $0xb0] sm:$0xff]
    %v67 = vld [vmem:[#allocation2 + $0xb8] sm:$0xff]
    %v68 = vld [vmem:[#allocation2 + $0xc0] sm:$0xff]
    %v69 = vld [vmem:[#allocation2 + $0xc8] sm:$0xff]
    %v70 = vld [vmem:[#allocation2 + $0xd0] sm:$0xff]
    %v71 = vld [vmem:[#allocation2 + $0xd8] sm:$0xff]
    %v72 = vld [vmem:[#allocation2 + $0xe0] sm:$0xff]
    %v73 = vld [vmem:[#allocation2 + $0xe8] sm:$0xff]
    %v74 = vld [vmem:[#allocation2 + $0xf0] sm:$0xff]
    %v75 = vld [vmem:[#allocation2 + $0xf8] sm:$0xff]
    %v76 = vpack.c.bf16 %v45, %v44
    %v77 = vpack.c.bf16 %v47, %v46
    %v78 = vpack.c.bf16 %v49, %v48
    %v79 = vpack.c.bf16 %v51, %v50
    %v80 = vpack.c.bf16 %v53, %v52
    %v81 = vpack.c.bf16 %v55, %v54
    %v82 = vpack.c.bf16 %v57, %v56
    %v83 = vpack.c.bf16 %v59, %v58
    %v84 = vpack.c.bf16 %v61, %v60
    %v85 = vpack.c.bf16 %v63, %v62
    %v86 = vpack.c.bf16 %v65, %v64
    %v87 = vpack.c.bf16 %v67, %v66
    %v88 = vpack.c.bf16 %v69, %v68
    %v89 = vpack.c.bf16 %v71, %v70
    %v90 = vpack.c.bf16 %v73, %v72
    %v91 = vpack.c.bf16 %v75, %v74
    %v92 = vld [vmem:[#allocation5] sm:$0xff]
    %v93 = vld [vmem:[#allocation5 + $0x8] sm:$0xff]
    %v94 = vld [vmem:[#allocation5 + $0x10] sm:$0xff]
    %v95 = vld [vmem:[#allocation5 + $0x18] sm:$0xff]
    %v96 = vld [vmem:[#allocation5 + $0x20] sm:$0xff]
    %v97 = vld [vmem:[#allocation5 + $0x28] sm:$0xff]
    %v98 = vld [vmem:[#allocation5 + $0x30] sm:$0xff]
    %v99 = vld [vmem:[#allocation5 + $0x38] sm:$0xff]
    %v100 = vld [vmem:[#allocation5 + $0x40] sm:$0xff]
    %v101 = vld [vmem:[#allocation5 + $0x48] sm:$0xff]
    %v102 = vld [vmem:[#allocation5 + $0x50] sm:$0xff]
    %v103 = vld [vmem:[#allocation5 + $0x58] sm:$0xff]
    %v104 = vld [vmem:[#allocation5 + $0x60] sm:$0xff]
    %v105 = vld [vmem:[#allocation5 + $0x68] sm:$0xff]
    %v106 = vld [vmem:[#allocation5 + $0x70] sm:$0xff]
    %v107 = vld [vmem:[#allocation5 + $0x78] sm:$0xff]
    %v108 = vpack.c.bf16 %v93, %v92
    %v109 = vpack.c.bf16 %v95, %v94
    %v110 = vpack.c.bf16 %v97, %v96
    %v111 = vpack.c.bf16 %v99, %v98
    %v112 = vpack.c.bf16 %v101, %v100
    %v113 = vpack.c.bf16 %v103, %v102
    %v114 = vpack.c.bf16 %v105, %v104
    %v115 = vpack.c.bf16 %v107, %v106
    %v116 = vld [vmem:[%s2] sm:$0x1]
    %v118 = vlaneseq
    %v119 = vshrl.u32 %v118, 7
    %v120 = vsub.s32 0, %v119
    %v121 = vrot.slane %v116, %v120
    %123 = vmatprep.subr.bf16.mxu0 0
    %124 = vmatpush1.bf16.msra.mxu0 %v108
    %125 = vmatprep.subr.bf16.mxu0 0
    %126 = vmatpush1.bf16.msra.mxu0 %v109
    %127 = vmatprep.subr.bf16.mxu0 0
    %128 = vmatpush1.bf16.msra.mxu0 %v110
    %129 = vmatprep.subr.bf16.mxu0 0
    %130 = vmatpush1.bf16.msra.mxu0 %v111
    %131 = vmatprep.subr.bf16.mxu0 0
    %132 = vmatpush1.bf16.msra.mxu0 %v112
    %133 = vmatprep.subr.bf16.mxu0 0
    %134 = vmatpush1.bf16.msra.mxu0 %v113
    %135 = vmatprep.subr.bf16.mxu0 0
    %136 = vmatpush1.bf16.msra.mxu0 %v114
    %137 = vmatprep.subr.bf16.mxu0 0
    %138 = vmatpush1.bf16.msra.mxu0 %v115
    %139 = vmatprep.subr.bf16.mxu0 0
    %140 = vmatpush1.bf16.msra.mxu0 0
    %141 = vmatprep.subr.bf16.mxu0 0
    %142 = vmatpush1.bf16.msra.mxu0 0
    %143 = vmatprep.subr.bf16.mxu0 0
    %144 = vmatpush1.bf16.msra.mxu0 0
    %145 = vmatprep.subr.bf16.mxu0 0
    %146 = vmatpush1.bf16.msra.mxu0 0
    %147 = vmatprep.subr.bf16.mxu0 0
    %148 = vmatpush1.bf16.msra.mxu0 0
    %149 = vmatprep.subr.bf16.mxu0 0
    %150 = vmatpush1.bf16.msra.mxu0 0
    %151 = vmatprep.subr.bf16.mxu0 0
    %152 = vmatpush1.bf16.msra.mxu0 0
    %153 = vmatprep.subr.bf16.mxu0 0
    %154 = vmatpush1.bf16.msra.mxu0 0
    %155 = vmatprep.mubr.bf16.mxu0 0
    %156 = vmatmul.mubr.bf16.gmra.mrb[0].mxu0 %v76
    %v157 = vpop.f32.mrb[0].mxu0
    %v158 = vadd.f32 %v121, %v157
    %v159 = vpop.f32.mrb[0].mxu0
    %v160 = vpop.f32.mrb[0].mxu0
    %v161 = vadd.f32 %v121, %v160
    %v162 = vpop.f32.mrb[0].mxu0
    %163 = vmatprep.mubr.bf16.mxu0 0
    %164 = vmatmul.mubr.bf16.gmra.mrb[0].mxu0 %v77
    %v165 = vpop.f32.mrb[0].mxu0
    %v166 = vadd.f32 %v121, %v165
    %v167 = vpop.f32.mrb[0].mxu0
    %v168 = vpop.f32.mrb[0].mxu0
    %v169 = vadd.f32 %v121, %v168
    %v170 = vpop.f32.mrb[0].mxu0
    %171 = vmatprep.mubr.bf16.mxu0 0
    %172 = vmatmul.mubr.bf16.gmra.mrb[0].mxu0 %v78
    %v173 = vpop.f32.mrb[0].mxu0
    %v174 = vadd.f32 %v121, %v173
    %v175 = vpop.f32.mrb[0].mxu0
    %v176 = vpop.f32.mrb[0].mxu0
    %v177 = vadd.f32 %v121, %v176
    %v178 = vpop.f32.mrb[0].mxu0
    %179 = vmatprep.mubr.bf16.mxu0 0
    %180 = vmatmul.mubr.bf16.gmra.mrb[0].mxu0 %v79
    %v181 = vpop.f32.mrb[0].mxu0
    %v182 = vadd.f32 %v121, %v181
    %v183 = vpop.f32.mrb[0].mxu0
    %v184 = vpop.f32.mrb[0].mxu0
    %v185 = vadd.f32 %v121, %v184
    %v186 = vpop.f32.mrb[0].mxu0
    %187 = vmatprep.mubr.bf16.mxu0 0
    %188 = vmatmul.mubr.bf16.gmra.mrb[0].mxu0 %v80
    %v189 = vpop.f32.mrb[0].mxu0
    %v190 = vadd.f32 %v121, %v189
    %v191 = vpop.f32.mrb[0].mxu0
    %v192 = vpop.f32.mrb[0].mxu0
    %v193 = vadd.f32 %v121, %v192
    %v194 = vpop.f32.mrb[0].mxu0
    %195 = vmatprep.mubr.bf16.mxu0 0
    %196 = vmatmul.mubr.bf16.gmra.mrb[0].mxu0 %v81
    %v197 = vpop.f32.mrb[0].mxu0
    %v198 = vadd.f32 %v121, %v197
    %v199 = vpop.f32.mrb[0].mxu0
    %v200 = vpop.f32.mrb[0].mxu0
    %v201 = vadd.f32 %v121, %v200
    %v202 = vpop.f32.mrb[0].mxu0
    %203 = vmatprep.mubr.bf16.mxu0 0
    %204 = vmatmul.mubr.bf16.gmra.mrb[0].mxu0 %v82
    %v205 = vpop.f32.mrb[0].mxu0
    %v206 = vadd.f32 %v121, %v205
    %v207 = vpop.f32.mrb[0].mxu0
    %v208 = vpop.f32.mrb[0].mxu0
    %v209 = vadd.f32 %v121, %v208
    %v210 = vpop.f32.mrb[0].mxu0
    %211 = vmatprep.mubr.bf16.mxu0 0
    %212 = vmatmul.mubr.bf16.gmra.mrb[0].mxu0 %v83
    %v213 = vpop.f32.mrb[0].mxu0
    %v214 = vadd.f32 %v121, %v213
    %v215 = vpop.f32.mrb[0].mxu0
    %v216 = vpop.f32.mrb[0].mxu0
    %v217 = vadd.f32 %v121, %v216
    %v218 = vpop.f32.mrb[0].mxu0
    %219 = vmatprep.mubr.bf16.mxu0 0
    %220 = vmatmul.mubr.bf16.gmra.mrb[0].mxu0 %v84
    %v221 = vpop.f32.mrb[0].mxu0
    %v222 = vadd.f32 %v121, %v221
    %v223 = vpop.f32.mrb[0].mxu0
    %v224 = vpop.f32.mrb[0].mxu0
    %v225 = vadd.f32 %v121, %v224
    %v226 = vpop.f32.mrb[0].mxu0
    %227 = vmatprep.mubr.bf16.mxu0 0
    %228 = vmatmul.mubr.bf16.gmra.mrb[0].mxu0 %v85
    %v229 = vpop.f32.mrb[0].mxu0
    %v230 = vadd.f32 %v121, %v229
    %v231 = vpop.f32.mrb[0].mxu0
    %v232 = vpop.f32.mrb[0].mxu0
    %v233 = vadd.f32 %v121, %v232
    %v234 = vpop.f32.mrb[0].mxu0
    %235 = vmatprep.mubr.bf16.mxu0 0
    %236 = vmatmul.mubr.bf16.gmra.mrb[0].mxu0 %v86
    %v237 = vpop.f32.mrb[0].mxu0
    %v238 = vadd.f32 %v121, %v237
    %v239 = vpop.f32.mrb[0].mxu0
    %v240 = vpop.f32.mrb[0].mxu0
    %v241 = vadd.f32 %v121, %v240
    %v242 = vpop.f32.mrb[0].mxu0
    %243 = vmatprep.mubr.bf16.mxu0 0
    %244 = vmatmul.mubr.bf16.gmra.mrb[0].mxu0 %v87
    %v245 = vpop.f32.mrb[0].mxu0
    %v246 = vadd.f32 %v121, %v245
    %v247 = vpop.f32.mrb[0].mxu0
    %v248 = vpop.f32.mrb[0].mxu0
    %v249 = vadd.f32 %v121, %v248
    %v250 = vpop.f32.mrb[0].mxu0
    %251 = vmatprep.mubr.bf16.mxu0 0
    %252 = vmatmul.mubr.bf16.gmra.mrb[0].mxu0 %v88
    %v253 = vpop.f32.mrb[0].mxu0
    %v254 = vadd.f32 %v121, %v253
    %v255 = vpop.f32.mrb[0].mxu0
    %v256 = vpop.f32.mrb[0].mxu0
    %v257 = vadd.f32 %v121, %v256
    %v258 = vpop.f32.mrb[0].mxu0
    %259 = vmatprep.mubr.bf16.mxu0 0
    %260 = vmatmul.mubr.bf16.gmra.mrb[0].mxu0 %v89
    %v261 = vpop.f32.mrb[0].mxu0
    %v262 = vadd.f32 %v121, %v261
    %v263 = vpop.f32.mrb[0].mxu0
    %v264 = vpop.f32.mrb[0].mxu0
    %v265 = vadd.f32 %v121, %v264
    %v266 = vpop.f32.mrb[0].mxu0
    %267 = vmatprep.mubr.bf16.mxu0 0
    %268 = vmatmul.mubr.bf16.gmra.mrb[0].mxu0 %v90
    %v269 = vpop.f32.mrb[0].mxu0
    %v270 = vadd.f32 %v121, %v269
    %v271 = vpop.f32.mrb[0].mxu0
    %v272 = vpop.f32.mrb[0].mxu0
    %v273 = vadd.f32 %v121, %v272
    %v274 = vpop.f32.mrb[0].mxu0
    %275 = vmatprep.mubr.bf16.mxu0 0
    %276 = vmatmul.mubr.bf16.gmra.mrb[0].mxu0 %v91
    %v277 = vpop.f32.mrb[0].mxu0
    %v278 = vadd.f32 %v121, %v277
    %v279 = vpop.f32.mrb[0].mxu0
    %v280 = vpop.f32.mrb[0].mxu0
    %v281 = vadd.f32 %v121, %v280
    %v282 = vpop.f32.mrb[0].mxu0
    %283 = vdwg.mxu0
    %284 = vst [vmem:[#allocation7] sm:$0xff] %v158
    %285 = vst [vmem:[#allocation7 + $0x8] sm:$0xff] %v161
    %286 = vst [vmem:[#allocation7 + $0x10] sm:$0xff] %v166
    %287 = vst [vmem:[#allocation7 + $0x18] sm:$0xff] %v169
    %288 = vst [vmem:[#allocation7 + $0x20] sm:$0xff] %v174
    %289 = vst [vmem:[#allocation7 + $0x28] sm:$0xff] %v177
    %290 = vst [vmem:[#allocation7 + $0x30] sm:$0xff] %v182
    %291 = vst [vmem:[#allocation7 + $0x38] sm:$0xff] %v185
    %292 = vst [vmem:[#allocation7 + $0x40] sm:$0xff] %v190
    %293 = vst [vmem:[#allocation7 + $0x48] sm:$0xff] %v193
    %294 = vst [vmem:[#allocation7 + $0x50] sm:$0xff] %v198
    %295 = vst [vmem:[#allocation7 + $0x58] sm:$0xff] %v201
    %296 = vst [vmem:[#allocation7 + $0x60] sm:$0xff] %v206
    %297 = vst [vmem:[#allocation7 + $0x68] sm:$0xff] %v209
    %298 = vst [vmem:[#allocation7 + $0x70] sm:$0xff] %v214
    %299 = vst [vmem:[#allocation7 + $0x78] sm:$0xff] %v217
    %300 = vst [vmem:[#allocation7 + $0x80] sm:$0xff] %v222
    %301 = vst [vmem:[#allocation7 + $0x88] sm:$0xff] %v225
    %302 = vst [vmem:[#allocation7 + $0x90] sm:$0xff] %v230
    %303 = vst [vmem:[#allocation7 + $0x98] sm:$0xff] %v233
    %304 = vst [vmem:[#allocation7 + $0xa0] sm:$0xff] %v238
    %305 = vst [vmem:[#allocation7 + $0xa8] sm:$0xff] %v241
    %306 = vst [vmem:[#allocation7 + $0xb0] sm:$0xff] %v246
    %307 = vst [vmem:[#allocation7 + $0xb8] sm:$0xff] %v249
    %308 = vst [vmem:[#allocation7 + $0xc0] sm:$0xff] %v254
    %309 = vst [vmem:[#allocation7 + $0xc8] sm:$0xff] %v257
    %310 = vst [vmem:[#allocation7 + $0xd0] sm:$0xff] %v262
    %311 = vst [vmem:[#allocation7 + $0xd8] sm:$0xff] %v265
    %312 = vst [vmem:[#allocation7 + $0xe0] sm:$0xff] %v270
    %313 = vst [vmem:[#allocation7 + $0xe8] sm:$0xff] %v273
    %314 = vst [vmem:[#allocation7 + $0xf0] sm:$0xff] %v278
    %315 = vst [vmem:[#allocation7 + $0xf8] sm:$0xff] %v281
    // Predicated region
    $region22: #{tpu_custom_call.1} parent=1 // pred_check
      _
    $region23: #{tpu_custom_call.1} parent=1 // pred_check_branch
      %317 = sbr.rel (0) target = $region25
    $region24: #{tpu_custom_call.1} parent=1 // pred_region
      %s319 = ssub.s32 4096, 4096
      %320 = vsyncadd [#allocation4], %s319
      %s321 = sshll.u32 [#allocation7], 4
      %s322 = int_to_ptr.vmem [resolvable:$true] %s321
      %327 = dma.vmem_to_hbm [thread:$0]  %s322, 4096, %s3, [#allocation4], 128, 128, 8
    $region25: #{tpu_custom_call.1} parent=1 // pred_fallthru
      _
    // Predicated region
    $region26: #{tpu_custom_call.1} parent=1 // pred_check
      _
    $region27: #{tpu_custom_call.1} parent=1 // pred_check_branch
      %329 = sbr.rel (0) target = $region29
    $region28: #{tpu_custom_call.1} parent=1 // pred_region
      %330 = dma.done [#allocation4], 4096
    $region29: #{tpu_custom_call.1} parent=1 // pred_fallthru
      _
    %331 = vsyncpa [#allocation3], 1
    %332 = vsyncpa [#allocation6], 1
    %333 = vsyncpa [#allocation4], 1

</llo_original>
